<compile_context>
chip_gen: v5e
topology: v5e:2x2
jax: 0.10.0
libtpu: 0.0.40
codegen_flags: <defaults>
</compile_context>

<pallas_src>
import functools

import jax
import jax.numpy as jnp
from jax.experimental import pallas as pl
from jax.experimental.pallas import tpu as pltpu

LANE = 128                        # lane width of a TPU vreg
_VMEM_LIMIT = 48 * 1024 * 1024    # <= ~48 MiB keeps v7x (64 MiB physical) safe


def _round_up(x, m):
    return ((x + m - 1) // m) * m


def _choose_tiles(n_tgt, n_src):
    """Row tile (MXU M dim) and source/reduction tile (lane dim of the mask)."""
    # tm: multiple of 32 (int8 sublane packing; also covers bf16's 16), <= 256.
    tm = min(256, _round_up(n_tgt, 32))
    n_t_pad = _round_up(n_tgt, tm)
    # tk: lane (last) dim of the mask tile -> multiple of 128, up to 1024.
    tk = min(1024, _round_up(n_src, LANE))
    # Source padding must also cover n_t_pad so target rows can be windowed
    # directly out of the padded source features.
    n_s_pad = max(_round_up(n_src, tk), _round_up(n_t_pad, tk))
    return tm, tk, n_t_pad, n_s_pad


def _choose_tn(d_out_pad, n_row_tiles):
    """Output-feature tile.  Must divide d_out_pad (a multiple of 128).
    When there is a single row tile, prefer 128 so the second 'parallel' grid
    axis can feed both v7x TensorCores."""
    if d_out_pad % 256 != 0 or (n_row_tiles == 1 and d_out_pad >= 256):
        return 128
    return 256


# ----------------------------------------------------------------------------
# Pallas kernels
# ----------------------------------------------------------------------------
def _project_kernel(x_ref, w_ref, o_ref):
    # h = x_src @ W_neigh : bf16 operands, f32 MXU accumulation, bf16 result.
    o_ref[...] = jnp.dot(x_ref[...], w_ref[...],
                         preferred_element_type=jnp.float32).astype(o_ref.dtype)


def _sage_fused_kernel(adj_ref, xsrc_ref, xtgt_ref, wneigh_ref, wself_ref,
                       b_ref, rdeg_ref, o_ref, acc_ref, *, apply_relu):
    # grid = (row_tiles, n_tiles, k_tiles); k (source) is the reduction axis.
    # adj_ref  : (tm, tk)      int8 neighbor-count mask tile (exact integers)
    # xsrc_ref : (tk, d_in)    bf16 source-feature tile
    # xtgt_ref : (tm, d_in)    bf16 target-feature tile (leading rows of x_src)
    # wneigh_ref,(d_in, tn)    bf16 weights
    # wself_ref: (d_in, tn)
    # b_ref    : (1, tn)       f32 bias
    # rdeg_ref : (tm, 1)       f32 reciprocal degree
    # acc_ref  : (tm, tn)      f32 accumulator, resident across k
    k = pl.program_id(2)

    @pl.when(k == 0)
    def _():
        acc_ref[...] = jnp.zeros_like(acc_ref)

    # Project this source tile on the fly (no h round trip through HBM).
    h = jnp.dot(xsrc_ref[...], wneigh_ref[...],
                preferred_element_type=jnp.float32).astype(jnp.bfloat16)
    mask = adj_ref[...].astype(jnp.bfloat16)        # exact small ints
    acc_ref[...] += jnp.dot(mask, h, preferred_element_type=jnp.float32)

    @pl.when(k == pl.num_programs(2) - 1)
    def _():
        self_term = jnp.dot(xtgt_ref[...], wself_ref[...],
                            preferred_element_type=jnp.float32)
        res = self_term + b_ref[...] + rdeg_ref[...] * acc_ref[...]
        if apply_relu:
            res = jnp.maximum(res, 0.0)
        o_ref[...] = res.astype(o_ref.dtype)


def _sage_agg_kernel(adj_ref, h_ref, xtgt_ref, wself_ref, b_ref, rdeg_ref,
                     o_ref, acc_ref, *, apply_relu):
    # Non-fused variant: h = x_src @ W_neigh is precomputed by _project_kernel.
    k = pl.program_id(2)

    @pl.when(k == 0)
    def _():
        acc_ref[...] = jnp.zeros_like(acc_ref)

    mask = adj_ref[...].astype(jnp.bfloat16)
    acc_ref[...] += jnp.dot(mask, h_ref[...], preferred_element_type=jnp.float32)

    @pl.when(k == pl.num_programs(2) - 1)
    def _():
        self_term = jnp.dot(xtgt_ref[...], wself_ref[...],
                            preferred_element_type=jnp.float32)
        res = self_term + b_ref[...] + rdeg_ref[...] * acc_ref[...]
        if apply_relu:
            res = jnp.maximum(res, 0.0)
        o_ref[...] = res.astype(o_ref.dtype)


# ----------------------------------------------------------------------------
# One SAGE layer (mean aggregator)
# ----------------------------------------------------------------------------
def sage_conv_pallas(adj_mask, rdeg, x_src, w_self, w_neigh, bias,
                     *, apply_relu, out_dtype, tm, tk):
    """wholegraph SAGEConv('mean').

    adj_mask : (n_t_pad, n_s_pad) int8  neighbor-count matrix (pre-padded)
    rdeg     : (n_t_pad, 1)       f32   1/deg per target row (0 on pad rows)
    x_src    : (n_rows, d_in)     bf16  source features (targets = leading rows)
    w_self   : (d_in, d_out)      bf16
    w_neigh  : (d_in, d_out)      bf16
    bias     : (d_out,)           f32
    Returns the padded (n_t_pad, d_out) output; caller slices valid rows/cols.
    """
    n_t_pad, n_s_pad = adj_mask.shape
    d_in = x_src.shape[1]
    d_out = w_self.shape[1]

    x = x_src.astype(jnp.bfloat16)
    rows = x.shape[0]
    if rows < n_s_pad:
        x = jnp.pad(x, ((0, n_s_pad - rows), (0, 0)))
    elif rows > n_s_pad:
        x = x[:n_s_pad]

    bias2d = bias.reshape(1, d_out)
    n_row = n_t_pad // tm
    n_k = n_s_pad // tk
    tn = _choose_tn(d_out, n_row)
    n_n = d_out // tn

    params = pltpu.CompilerParams(
        dimension_semantics=("parallel", "parallel", "arbitrary"),
        vmem_limit_bytes=_VMEM_LIMIT)

    if n_row == 1:
        # Fused path: project each source tile inside the k loop.
        return pl.pallas_call(
            functools.partial(_sage_fused_kernel, apply_relu=apply_relu),
            out_shape=jax.ShapeDtypeStruct((n_t_pad, d_out), out_dtype),
            grid_spec=pltpu.PrefetchScalarGridSpec(
                num_scalar_prefetch=0,
                grid=(n_row, n_n, n_k),
                in_specs=[
                    pl.BlockSpec((tm, tk), lambda i, j, k: (i, k)),     # int8 mask
                    pl.BlockSpec((tk, d_in), lambda i, j, k: (k, 0)),   # x_src tile
                    pl.BlockSpec((tm, d_in), lambda i, j, k: (i, 0)),   # x_tgt tile
                    pl.BlockSpec((d_in, tn), lambda i, j, k: (0, j)),   # W_neigh
                    pl.BlockSpec((d_in, tn), lambda i, j, k: (0, j)),   # W_self
                    pl.BlockSpec((1, tn), lambda i, j, k: (0, j)),      # bias
                    pl.BlockSpec((tm, 1), lambda i, j, k: (i, 0)),      # 1/deg
                ],
                out_specs=pl.BlockSpec((tm, tn), lambda i, j, k: (i, j)),
                scratch_shapes=[pltpu.VMEM((tm, tn), jnp.float32)],
            ),
            compiler_params=params,
        )(adj_mask, x, x, w_neigh, w_self, bias2d, rdeg)

    # Multiple row tiles: project once (kernel A), then aggregate (kernel B),
    # so the projection is not recomputed per row tile.
    h = pl.pallas_call(
        _project_kernel,
        out_shape=jax.ShapeDtypeStruct((n_s_pad, d_out), jnp.bfloat16),
        grid_spec=pltpu.PrefetchScalarGridSpec(
            num_scalar_prefetch=0,
            grid=(n_k,),
            in_specs=[
                pl.BlockSpec((tk, d_in), lambda k: (k, 0)),
                pl.BlockSpec((d_in, d_out), lambda k: (0, 0)),
            ],
            out_specs=pl.BlockSpec((tk, d_out), lambda k: (k, 0)),
        ),
        compiler_params=pltpu.CompilerParams(
            dimension_semantics=("parallel",),
            vmem_limit_bytes=_VMEM_LIMIT),
    )(x, w_neigh)

    return pl.pallas_call(
        functools.partial(_sage_agg_kernel, apply_relu=apply_relu),
        out_shape=jax.ShapeDtypeStruct((n_t_pad, d_out), out_dtype),
        grid_spec=pltpu.PrefetchScalarGridSpec(
            num_scalar_prefetch=0,
            grid=(n_row, n_n, n_k),
            in_specs=[
                pl.BlockSpec((tm, tk), lambda i, j, k: (i, k)),     # int8 mask
                pl.BlockSpec((tk, tn), lambda i, j, k: (k, j)),     # projected h
                pl.BlockSpec((tm, d_in), lambda i, j, k: (i, 0)),   # x_tgt tile
                pl.BlockSpec((d_in, tn), lambda i, j, k: (0, j)),   # W_self
                pl.BlockSpec((1, tn), lambda i, j, k: (0, j)),      # bias
                pl.BlockSpec((tm, 1), lambda i, j, k: (i, 0)),      # 1/deg
            ],
            out_specs=pl.BlockSpec((tm, tn), lambda i, j, k: (i, j)),
            scratch_shapes=[pltpu.VMEM((tm, tn), jnp.float32)],
        ),
        compiler_params=params,
    )(adj_mask, h, x, w_self, bias2d, rdeg)


# ----------------------------------------------------------------------------
# Glue: synthetic sampled sub-graphs (0/1-ish neighbor counts + degrees).
# ----------------------------------------------------------------------------
def make_neighbor_mask(key, n_targets, n_sources, max_neighbors):
    """Synthetic sampler output as a dense neighbor-count matrix + degrees.
    TODO(synk): a production port would keep the sampler's CSR (csr_row_ptr /
    csr_col_ind) and aggregate via a scalar-prefetch row gather instead of a
    dense [T, S] matmul; the dense form keeps this script self-contained."""
    kd, kc = jax.random.split(key)
    deg = jax.random.randint(kd, (n_targets,), 1, max_neighbors + 1)
    cols = jax.random.randint(kc, (n_targets, max_neighbors), 0, n_sources)
    valid = (jnp.arange(max_neighbors)[None, :] < deg[:, None]).astype(jnp.float32)
    onehot = jax.nn.one_hot(cols, n_sources, dtype=jnp.float32)     # (T, K, S)
    mask = jnp.einsum('tk,tks->ts', valid, onehot)                  # integer counts
    return mask, deg


def prepare_sub_graph(mask, deg):
    """create_sub_graph analogue: pad + int8-cast the neighbor-count matrix
    ONCE at sub-graph build time, and build the per-row reciprocal degree."""
    n_t, n_s = mask.shape
    tm, tk, n_t_pad, n_s_pad = _choose_tiles(n_t, n_s)
    mask_p = jnp.zeros((n_t_pad, n_s_pad), jnp.int8)
    mask_p = mask_p.at[:n_t, :n_s].set(mask.astype(jnp.int8))
    rdeg = jnp.zeros((n_t_pad, 1), jnp.float32)
    rdeg = rdeg.at[:n_t, 0].set(1.0 / jnp.maximum(deg.astype(jnp.float32), 1.0))
    return mask_p, rdeg, tm, tk


class HomoGNNModelPallas:
    """JAX/Pallas port of HomoGNNModel (framework='wg', model='sage')."""

    def __init__(self, key, in_feat_dim, hidden_feat_dim, class_count,
                 num_layer, num_nodes):
        self.num_layer = num_layer
        self.class_count = class_count
        num_head = 1  # model == 'sage'
        assert hidden_feat_dim % num_head == 0
        keys = jax.random.split(key, 1 + 3 * num_layer)

        in_pad = _round_up(in_feat_dim, LANE)
        hid_pad = _round_up(hidden_feat_dim // num_head, LANE)
        cls_pad = _round_up(class_count, LANE)

        # WholeMemoryEmbedding table (synthetic); lane-padded and stored bf16
        # so the hop-0 gather is half the HBM traffic of f32.
        emb = jax.random.normal(keys[0], (num_nodes, in_feat_dim), jnp.float32)
        self.node_embedding = jnp.pad(
            emb, ((0, 0), (0, in_pad - in_feat_dim))).astype(jnp.bfloat16)

        self.layers = []
        for i in range(num_layer):
            layer_out = hidden_feat_dim // num_head if i != num_layer - 1 else class_count
            layer_in = in_feat_dim if i == 0 else hidden_feat_dim
            inp_pad = in_pad if i == 0 else hid_pad
            out_pad = hid_pad if i != num_layer - 1 else cls_pad
            scale = 1.0 / jnp.sqrt(jnp.float32(layer_in))
            w_self = jax.random.normal(keys[1 + 3 * i],
                                       (layer_in, layer_out), jnp.float32) * scale
            w_neigh = jax.random.normal(keys[2 + 3 * i],
                                        (layer_in, layer_out), jnp.float32) * scale
            b = jax.random.normal(keys[3 + 3 * i], (layer_out,), jnp.float32) * 0.01
            # Zero-pad to lane-dense shapes; MXU operands stored bf16 once.
            w_self_p = jnp.zeros((inp_pad, out_pad), jnp.float32
                                 ).at[:layer_in, :layer_out].set(w_self
                                 ).astype(jnp.bfloat16)
            w_neigh_p = jnp.zeros((inp_pad, out_pad), jnp.float32
                                  ).at[:layer_in, :layer_out].set(w_neigh
                                  ).astype(jnp.bfloat16)
            b_p = jnp.zeros((out_pad,), jnp.float32).at[:layer_out].set(b)
            self.layers.append((w_self_p, w_neigh_p, b_p))

    def forward(self, target_gids, prepared_sub_graphs):
        """target_gids[i]: int ids per hop (target_gids[0] is the largest set);
        prepared_sub_graphs[i]: (int8 neighbor-count matrix, 1/deg column, tm, tk)."""
        tiles = tuple((tm, tk) for (_, _, tm, tk) in prepared_sub_graphs)
        masks = tuple(p[0] for p in prepared_sub_graphs)
        rdegs = tuple(p[1] for p in prepared_sub_graphs)
        n_final = int(target_gids[self.num_layer].shape[0])
        num_layer = self.num_layer
        class_count = self.class_count

        # TODO(synk): jit-per-call retraces on new hop sizes; a production port
        # would cache compiled functions by (hop sizes, tile config).
        @jax.jit
        def run(emb, layer_params, gid0, masks, rdegs):
            # x_feat = self.gather_fn(target_gids[0])  -- bf16 gather
            x = jnp.take(emb, gid0, axis=0)
            for i in range(num_layer):
                w_self, w_neigh, b = layer_params[i]
                last = (i == num_layer - 1)
                tm, tk = tiles[i]
                x = sage_conv_pallas(masks[i], rdegs[i], x, w_self, w_neigh, b,
                                     apply_relu=not last,
                                     out_dtype=jnp.float32 if last else jnp.bfloat16,
                                     tm=tm, tk=tk)
                # TODO(synk): training-mode F.dropout omitted; inference path
                # (training=False) makes dropout an identity.
            # 'sage' => mean_output is False; strip target-row and lane padding.
            return x[:n_final, :class_count]

        return run(self.node_embedding, tuple(self.layers), target_gids[0],
                   masks, rdegs)


# Pure-JAX reference mirroring the kernel's bf16-input / f32-accumulate numerics.
def reference_forward(model, target_gids, masks, degs):
    def bf(a):
        return a.astype(jnp.bfloat16).astype(jnp.float32)

    x = jnp.take(model.node_embedding, target_gids[0], axis=0).astype(jnp.float32)
    for i in range(model.num_layer):
        n_tgt = int(target_gids[i + 1].shape[0])
        w_self, w_neigh, b = model.layers[i]
        ws = w_self.astype(jnp.float32)
        wn = w_neigh.astype(jnp.float32)
        mask = masks[i].astype(jnp.float32)
        deg = jnp.maximum(degs[i].astype(jnp.float32), 1.0)
        h = bf(x @ wn)                                   # projection, bf16 out
        out = x[:n_tgt] @ ws + b[None, :] + (mask @ h) / deg[:, None]
        if i != model.num_layer - 1:
            out = bf(jnp.maximum(out, 0.0))              # bf16 inter-layer storage
        x = out
    return x[:, :model.class_count]


if __name__ == "__main__":
    # Small, deterministic configuration (args analogue).
    num_layer = 2
    in_feat_dim = 32       # node_embedding.shape[1]
    hidden_feat_dim = 32   # args.hiddensize
    class_count = 8        # args.classnum
    max_neighbors = [4, 4]  # args.neighbors per layer
    batch = 8              # len(ids)
    num_nodes = 256        # size of the WholeMemory embedding table

    key = jax.random.PRNGKey(0)
    k_model, k_samp, _ = jax.random.split(key, 3)

    model = HomoGNNModelPallas(k_model, in_feat_dim, hidden_feat_dim,
                               class_count, num_layer, num_nodes)

    # Synthetic multilayer_sample_without_replacement output:
    # hop sizes (target_gids[0] largest ... target_gids[num_layer] == ids).
    hop_sizes = [64, 24, batch]
    kg = jax.random.split(k_samp, 2 * num_layer + 1)
    target_gids = [jax.random.randint(kg[h], (hop_sizes[h],), 0, num_nodes,
                                      dtype=jnp.int32)
                   for h in range(num_layer + 1)]
    masks, degs = [], []
    for i in range(num_layer):
        m, d = make_neighbor_mask(kg[num_layer + 1 + i], hop_sizes[i + 1],
                                  hop_sizes[i], max_neighbors[num_layer - 1 - i])
        masks.append(m)
        degs.append(d)
    # Pad + int8-cast once at sub-graph build time (not in the forward hot path).
    prepared = [prepare_sub_graph(m, d) for m, d in zip(masks, degs)]

    out = model.forward(target_gids, prepared)
    out = jax.block_until_ready(out)

    ref = reference_forward(model, target_gids, masks, degs)
    assert out.shape == (batch, class_count), out.shape
    assert out.dtype == jnp.float32
    assert jnp.allclose(out, ref, atol=5e-2, rtol=5e-2), \
        float(jnp.max(jnp.abs(out - ref)))

    # Extra correctness check: multi-row-tile (non-fused projection) path.
    n_t2, n_s2, d2 = 260, 384, 128
    k1, k2, k3, k4 = jax.random.split(jax.random.PRNGKey(1), 4)
    mask2, deg2 = make_neighbor_mask(k1, n_t2, n_s2, 6)
    x2 = jax.random.normal(k2, (n_s2, d2), jnp.float32).astype(jnp.bfloat16)
    ws2 = (jax.random.normal(k3, (d2, d2), jnp.float32) * 0.1).astype(jnp.bfloat16)
    wn2 = (jax.random.normal(k4, (d2, d2), jnp.float32) * 0.1).astype(jnp.bfloat16)
    b2 = jnp.zeros((d2,), jnp.float32)
    mask_p2, rdeg2, tm2, tk2 = prepare_sub_graph(mask2, deg2)
    out2 = sage_conv_pallas(mask_p2, rdeg2, x2, ws2, wn2, b2,
                            apply_relu=True, out_dtype=jnp.float32,
                            tm=tm2, tk=tk2)
    out2 = jax.block_until_ready(out2)[:n_t2]
    xf = x2.astype(jnp.float32)
    h2 = (xf @ wn2.astype(jnp.float32)).astype(jnp.bfloat16).astype(jnp.float32)
    ref2 = (xf[:n_t2] @ ws2.astype(jnp.float32)
            + (mask2 @ h2) / jnp.maximum(deg2.astype(jnp.float32), 1.0)[:, None])
    ref2 = jnp.maximum(ref2, 0.0)
    assert jnp.allclose(out2, ref2, atol=5e-2, rtol=5e-2), \
        float(jnp.max(jnp.abs(out2 - ref2)))

    print("KERNEL_OK")
</pallas_src>

<mosaic_0001>
module attributes {stable_mosaic.version = 11 : i64} {
  func.func @_sage_fused_kernel(%arg0: i32, %arg1: i32, %arg2: i32, %arg3: memref<32x128xi8, #tpu.memory_space<vmem>>, %arg4: memref<128x128xbf16, #tpu.memory_space<vmem>>, %arg5: memref<32x128xbf16, #tpu.memory_space<vmem>>, %arg6: memref<128x128xbf16, #tpu.memory_space<vmem>>, %arg7: memref<128x128xbf16, #tpu.memory_space<vmem>>, %arg8: memref<1x128xf32, #tpu.memory_space<vmem>>, %arg9: memref<32x1xf32, #tpu.memory_space<vmem>>, %arg10: memref<32x128xbf16, #tpu.memory_space<vmem>>, %arg11: memref<32x128xf32, #tpu.memory_space<vmem>>) attributes {dimension_semantics = [#tpu.dimension_semantics<parallel>, #tpu.dimension_semantics<parallel>, #tpu.dimension_semantics<arbitrary>], iteration_bounds = array<i64: 1, 1, 1>, scalar_prefetch = 0 : i64, scratch_operands = 1 : i64, tpu.core_type = #tpu.core_type<tc>, window_params = [{transform_indices = @transform_0, window_bounds = array<i64: 32, 128>}, {transform_indices = @transform_1, window_bounds = array<i64: 128, 128>}, {transform_indices = @transform_2, window_bounds = array<i64: 32, 128>}, {transform_indices = @transform_3, window_bounds = array<i64: 128, 128>}, {transform_indices = @transform_4, window_bounds = array<i64: 128, 128>}, {transform_indices = @transform_5, window_bounds = array<i64: 1, 128>}, {transform_indices = @transform_6, window_bounds = array<i64: 32, 1>}, {transform_indices = @transform_7, window_bounds = array<i64: 32, 128>}]} {
    %c0_i32 = arith.constant 0 : i32
    %0 = arith.cmpi eq, %arg2, %c0_i32 : i32
    %1 = arith.extui %0 : i1 to i32
    %c0_i32_0 = arith.constant 0 : i32
    %2 = arith.cmpi ne, %1, %c0_i32_0 : i32
    scf.if %2 {
      %cst_13 = arith.constant 0.000000e+00 : f32
      %16 = vector.broadcast %cst_13 : f32 to vector<32x128xf32>
      %c0_14 = arith.constant 0 : index
      %c0_15 = arith.constant 0 : index
      %17 = vector.load %arg11[%c0_14, %c0_15] : memref<32x128xf32, #tpu.memory_space<vmem>>, vector<32x128xf32>
      tpu.vector_store %arg11[%c0_14, %c0_15], %16 {strides = array<i32>} : memref<32x128xf32, #tpu.memory_space<vmem>>, vector<32x128xf32>,
    } else {
    }
    %c0 = arith.constant 0 : index
    %c0_1 = arith.constant 0 : index
    %3 = vector.load %arg4[%c0, %c0_1] : memref<128x128xbf16, #tpu.memory_space<vmem>>, vector<128x128xbf16>
    %c0_2 = arith.constant 0 : index
    %c0_3 = arith.constant 0 : index
    %4 = vector.load %arg6[%c0_2, %c0_3] : memref<128x128xbf16, #tpu.memory_space<vmem>>, vector<128x128xbf16>
    %cst = arith.constant dense<0.000000e+00> : vector<128x128xf32>
    %5 = tpu.matmul %3, %4, %cst {dimension_numbers = #tpu.dot_dimension_numbers<[1], [0], [0], [1], [0, 0, 1, 1], [], []>} : vector<128x128xbf16>, vector<128x128xbf16>, vector<128x128xf32> -> vector<128x128xf32>
    %6 = arith.truncf %5 : vector<128x128xf32> to vector<128x128xbf16>
    %c0_4 = arith.constant 0 : index
    %c0_5 = arith.constant 0 : index
    %7 = vector.load %arg3[%c0_4, %c0_5] : memref<32x128xi8, #tpu.memory_space<vmem>>, vector<32x128xi8>
    %8 = arith.sitofp %7 : vector<32x128xi8> to vector<32x128xbf16>
    %c0_6 = arith.constant 0 : index
    %c0_7 = arith.constant 0 : index
    %9 = vector.load %arg11[%c0_6, %c0_7] : memref<32x128xf32, #tpu.memory_space<vmem>>, vector<32x128xf32>
    %cst_8 = arith.constant dense<0.000000e+00> : vector<32x128xf32>
    %10 = tpu.matmul %8, %6, %cst_8 {dimension_numbers = #tpu.dot_dimension_numbers<[1], [0], [0], [1], [0, 0, 1, 1], [], []>} : vector<32x128xbf16>, vector<128x128xbf16>, vector<32x128xf32> -> vector<32x128xf32>
    %11 = arith.addf %9, %10 : vector<32x128xf32>
    %c0_9 = arith.constant 0 : index
    %c0_10 = arith.constant 0 : index
    %12 = vector.load %arg11[%c0_9, %c0_10] : memref<32x128xf32, #tpu.memory_space<vmem>>, vector<32x128xf32>
    tpu.vector_store %arg11[%c0_9, %c0_10], %11 {strides = array<i32>} : memref<32x128xf32, #tpu.memory_space<vmem>>, vector<32x128xf32>,
    %c0_i32_11 = arith.constant 0 : i32
    %13 = arith.cmpi eq, %arg2, %c0_i32_11 : i32
    %14 = arith.extui %13 : i1 to i32
    %c0_i32_12 = arith.constant 0 : i32
    %15 = arith.cmpi ne, %14, %c0_i32_12 : i32
    scf.if %15 {
      %c0_13 = arith.constant 0 : index
      %c0_14 = arith.constant 0 : index
      %16 = vector.load %arg5[%c0_13, %c0_14] : memref<32x128xbf16, #tpu.memory_space<vmem>>, vector<32x128xbf16>
      %c0_15 = arith.constant 0 : index
      %c0_16 = arith.constant 0 : index
      %17 = vector.load %arg7[%c0_15, %c0_16] : memref<128x128xbf16, #tpu.memory_space<vmem>>, vector<128x128xbf16>
      %cst_17 = arith.constant dense<0.000000e+00> : vector<32x128xf32>
      %18 = tpu.matmul %16, %17, %cst_17 {dimension_numbers = #tpu.dot_dimension_numbers<[1], [0], [0], [1], [0, 0, 1, 1], [], []>} : vector<32x128xbf16>, vector<128x128xbf16>, vector<32x128xf32> -> vector<32x128xf32>
      %c0_18 = arith.constant 0 : index
      %c0_19 = arith.constant 0 : index
      %19 = vector.load %arg8[%c0_18, %c0_19] : memref<1x128xf32, #tpu.memory_space<vmem>>, vector<1x128xf32>
      %20 = vector.broadcast %19 : vector<1x128xf32> to vector<32x128xf32>
      %21 = arith.addf %18, %20 : vector<32x128xf32>
      %c0_20 = arith.constant 0 : index
      %c0_21 = arith.constant 0 : index
      %22 = vector.load %arg9[%c0_20, %c0_21] : memref<32x1xf32, #tpu.memory_space<vmem>>, vector<32x1xf32>
      %c0_22 = arith.constant 0 : index
      %c0_23 = arith.constant 0 : index
      %23 = vector.load %arg11[%c0_22, %c0_23] : memref<32x128xf32, #tpu.memory_space<vmem>>, vector<32x128xf32>
      %24 = vector.broadcast %22 : vector<32x1xf32> to vector<32x128xf32>
      %25 = arith.mulf %24, %23 : vector<32x128xf32>
      %26 = arith.addf %21, %25 : vector<32x128xf32>
      %cst_24 = arith.constant 0.000000e+00 : f32
      %27 = vector.broadcast %cst_24 : f32 to vector<32x128xf32>
      %28 = arith.maximumf %26, %27 : vector<32x128xf32>
      %29 = arith.truncf %28 : vector<32x128xf32> to vector<32x128xbf16>
      %c0_25 = arith.constant 0 : index
      %c0_26 = arith.constant 0 : index
      %30 = vector.load %arg10[%c0_25, %c0_26] : memref<32x128xbf16, #tpu.memory_space<vmem>>, vector<32x128xbf16>
      tpu.vector_store %arg10[%c0_25, %c0_26], %29 {strides = array<i32>} : memref<32x128xbf16, #tpu.memory_space<vmem>>, vector<32x128xbf16>,
    } else {
    }
    return
  }
  func.func @transform_0(%arg0: i32, %arg1: i32, %arg2: i32) -> (i32, i32) {
    %c0_i32 = arith.constant 0 : i32
    return %arg0, %arg2 : i32, i32
  }
  func.func @transform_1(%arg0: i32, %arg1: i32, %arg2: i32) -> (i32, i32) {
    %c0_i32 = arith.constant 0 : i32
    %c0_i32_0 = arith.constant 0 : i32
    return %arg2, %c0_i32 : i32, i32
  }
  func.func @transform_2(%arg0: i32, %arg1: i32, %arg2: i32) -> (i32, i32) {
    %c0_i32 = arith.constant 0 : i32
    %c0_i32_0 = arith.constant 0 : i32
    return %arg0, %c0_i32 : i32, i32
  }
  func.func @transform_3(%arg0: i32, %arg1: i32, %arg2: i32) -> (i32, i32) {
    %c0_i32 = arith.constant 0 : i32
    %c0_i32_0 = arith.constant 0 : i32
    return %c0_i32, %arg1 : i32, i32
  }
  func.func @transform_4(%arg0: i32, %arg1: i32, %arg2: i32) -> (i32, i32) {
    %c0_i32 = arith.constant 0 : i32
    %c0_i32_0 = arith.constant 0 : i32
    return %c0_i32, %arg1 : i32, i32
  }
  func.func @transform_5(%arg0: i32, %arg1: i32, %arg2: i32) -> (i32, i32) {
    %c0_i32 = arith.constant 0 : i32
    %c0_i32_0 = arith.constant 0 : i32
    return %c0_i32, %arg1 : i32, i32
  }
  func.func @transform_6(%arg0: i32, %arg1: i32, %arg2: i32) -> (i32, i32) {
    %c0_i32 = arith.constant 0 : i32
    %c0_i32_0 = arith.constant 0 : i32
    return %arg0, %c0_i32 : i32, i32
  }
  func.func @transform_7(%arg0: i32, %arg1: i32, %arg2: i32) -> (i32, i32) {
    %c0_i32 = arith.constant 0 : i32
    return %arg0, %arg1 : i32, i32
  }
}

module attributes {stable_mosaic.version = 11 : i64} {
  func.func @_sage_fused_kernel(%arg0: i32, %arg1: i32, %arg2: i32, %arg3: memref<32x128xi8, #tpu.memory_space<vmem>>, %arg4: memref<128x128xbf16, #tpu.memory_space<vmem>>, %arg5: memref<32x128xbf16, #tpu.memory_space<vmem>>, %arg6: memref<128x128xbf16, #tpu.memory_space<vmem>>, %arg7: memref<128x128xbf16, #tpu.memory_space<vmem>>, %arg8: memref<1x128xf32, #tpu.memory_space<vmem>>, %arg9: memref<32x1xf32, #tpu.memory_space<vmem>>, %arg10: memref<32x128xf32, #tpu.memory_space<vmem>>, %arg11: memref<32x128xf32, #tpu.memory_space<vmem>>) attributes {dimension_semantics = [#tpu.dimension_semantics<parallel>, #tpu.dimension_semantics<parallel>, #tpu.dimension_semantics<arbitrary>], iteration_bounds = array<i64: 1, 1, 1>, scalar_prefetch = 0 : i64, scratch_operands = 1 : i64, tpu.core_type = #tpu.core_type<tc>, window_params = [{transform_indices = @transform_0, window_bounds = array<i64: 32, 128>}, {transform_indices = @transform_1, window_bounds = array<i64: 128, 128>}, {transform_indices = @transform_2, window_bounds = array<i64: 32, 128>}, {transform_indices = @transform_3, window_bounds = array<i64: 128, 128>}, {transform_indices = @transform_4, window_bounds = array<i64: 128, 128>}, {transform_indices = @transform_5, window_bounds = array<i64: 1, 128>}, {transform_indices = @transform_6, window_bounds = array<i64: 32, 1>}, {transform_indices = @transform_7, window_bounds = array<i64: 32, 128>}]} {
    %c0_i32 = arith.constant 0 : i32
    %0 = arith.cmpi eq, %arg2, %c0_i32 : i32
    %1 = arith.extui %0 : i1 to i32
    %c0_i32_0 = arith.constant 0 : i32
    %2 = arith.cmpi ne, %1, %c0_i32_0 : i32
    scf.if %2 {
      %cst_13 = arith.constant 0.000000e+00 : f32
      %16 = vector.broadcast %cst_13 : f32 to vector<32x128xf32>
      %c0_14 = arith.constant 0 : index
      %c0_15 = arith.constant 0 : index
      %17 = vector.load %arg11[%c0_14, %c0_15] : memref<32x128xf32, #tpu.memory_space<vmem>>, vector<32x128xf32>
      tpu.vector_store %arg11[%c0_14, %c0_15], %16 {strides = array<i32>} : memref<32x128xf32, #tpu.memory_space<vmem>>, vector<32x128xf32>,
    } else {
    }
    %c0 = arith.constant 0 : index
    %c0_1 = arith.constant 0 : index
    %3 = vector.load %arg4[%c0, %c0_1] : memref<128x128xbf16, #tpu.memory_space<vmem>>, vector<128x128xbf16>
    %c0_2 = arith.constant 0 : index
    %c0_3 = arith.constant 0 : index
    %4 = vector.load %arg6[%c0_2, %c0_3] : memref<128x128xbf16, #tpu.memory_space<vmem>>, vector<128x128xbf16>
    %cst = arith.constant dense<0.000000e+00> : vector<128x128xf32>
    %5 = tpu.matmul %3, %4, %cst {dimension_numbers = #tpu.dot_dimension_numbers<[1], [0], [0], [1], [0, 0, 1, 1], [], []>} : vector<128x128xbf16>, vector<128x128xbf16>, vector<128x128xf32> -> vector<128x128xf32>
    %6 = arith.truncf %5 : vector<128x128xf32> to vector<128x128xbf16>
    %c0_4 = arith.constant 0 : index
    %c0_5 = arith.constant 0 : index
    %7 = vector.load %arg3[%c0_4, %c0_5] : memref<32x128xi8, #tpu.memory_space<vmem>>, vector<32x128xi8>
    %8 = arith.sitofp %7 : vector<32x128xi8> to vector<32x128xbf16>
    %c0_6 = arith.constant 0 : index
    %c0_7 = arith.constant 0 : index
    %9 = vector.load %arg11[%c0_6, %c0_7] : memref<32x128xf32, #tpu.memory_space<vmem>>, vector<32x128xf32>
    %cst_8 = arith.constant dense<0.000000e+00> : vector<32x128xf32>
    %10 = tpu.matmul %8, %6, %cst_8 {dimension_numbers = #tpu.dot_dimension_numbers<[1], [0], [0], [1], [0, 0, 1, 1], [], []>} : vector<32x128xbf16>, vector<128x128xbf16>, vector<32x128xf32> -> vector<32x128xf32>
    %11 = arith.addf %9, %10 : vector<32x128xf32>
    %c0_9 = arith.constant 0 : index
    %c0_10 = arith.constant 0 : index
    %12 = vector.load %arg11[%c0_9, %c0_10] : memref<32x128xf32, #tpu.memory_space<vmem>>, vector<32x128xf32>
    tpu.vector_store %arg11[%c0_9, %c0_10], %11 {strides = array<i32>} : memref<32x128xf32, #tpu.memory_space<vmem>>, vector<32x128xf32>,
    %c0_i32_11 = arith.constant 0 : i32
    %13 = arith.cmpi eq, %arg2, %c0_i32_11 : i32
    %14 = arith.extui %13 : i1 to i32
    %c0_i32_12 = arith.constant 0 : i32
    %15 = arith.cmpi ne, %14, %c0_i32_12 : i32
    scf.if %15 {
      %c0_13 = arith.constant 0 : index
      %c0_14 = arith.constant 0 : index
      %16 = vector.load %arg5[%c0_13, %c0_14] : memref<32x128xbf16, #tpu.memory_space<vmem>>, vector<32x128xbf16>
      %c0_15 = arith.constant 0 : index
      %c0_16 = arith.constant 0 : index
      %17 = vector.load %arg7[%c0_15, %c0_16] : memref<128x128xbf16, #tpu.memory_space<vmem>>, vector<128x128xbf16>
      %cst_17 = arith.constant dense<0.000000e+00> : vector<32x128xf32>
      %18 = tpu.matmul %16, %17, %cst_17 {dimension_numbers = #tpu.dot_dimension_numbers<[1], [0], [0], [1], [0, 0, 1, 1], [], []>} : vector<32x128xbf16>, vector<128x128xbf16>, vector<32x128xf32> -> vector<32x128xf32>
      %c0_18 = arith.constant 0 : index
      %c0_19 = arith.constant 0 : index
      %19 = vector.load %arg8[%c0_18, %c0_19] : memref<1x128xf32, #tpu.memory_space<vmem>>, vector<1x128xf32>
      %20 = vector.broadcast %19 : vector<1x128xf32> to vector<32x128xf32>
      %21 = arith.addf %18, %20 : vector<32x128xf32>
      %c0_20 = arith.constant 0 : index
      %c0_21 = arith.constant 0 : index
      %22 = vector.load %arg9[%c0_20, %c0_21] : memref<32x1xf32, #tpu.memory_space<vmem>>, vector<32x1xf32>
      %c0_22 = arith.constant 0 : index
      %c0_23 = arith.constant 0 : index
      %23 = vector.load %arg11[%c0_22, %c0_23] : memref<32x128xf32, #tpu.memory_space<vmem>>, vector<32x128xf32>
      %24 = vector.broadcast %22 : vector<32x1xf32> to vector<32x128xf32>
      %25 = arith.mulf %24, %23 : vector<32x128xf32>
      %26 = arith.addf %21, %25 : vector<32x128xf32>
      %c0_24 = arith.constant 0 : index
      %c0_25 = arith.constant 0 : index
      %27 = vector.load %arg10[%c0_24, %c0_25] : memref<32x128xf32, #tpu.memory_space<vmem>>, vector<32x128xf32>
      tpu.vector_store %arg10[%c0_24, %c0_25], %26 {strides = array<i32>} : memref<32x128xf32, #tpu.memory_space<vmem>>, vector<32x128xf32>,
    } else {
    }
    return
  }
  func.func @transform_0(%arg0: i32, %arg1: i32, %arg2: i32) -> (i32, i32) {
    %c0_i32 = arith.constant 0 : i32
    return %arg0, %arg2 : i32, i32
  }
  func.func @transform_1(%arg0: i32, %arg1: i32, %arg2: i32) -> (i32, i32) {
    %c0_i32 = arith.constant 0 : i32
    %c0_i32_0 = arith.constant 0 : i32
    return %arg2, %c0_i32 : i32, i32
  }
  func.func @transform_2(%arg0: i32, %arg1: i32, %arg2: i32) -> (i32, i32) {
    %c0_i32 = arith.constant 0 : i32
    %c0_i32_0 = arith.constant 0 : i32
    return %arg0, %c0_i32 : i32, i32
  }
  func.func @transform_3(%arg0: i32, %arg1: i32, %arg2: i32) -> (i32, i32) {
    %c0_i32 = arith.constant 0 : i32
    %c0_i32_0 = arith.constant 0 : i32
    return %c0_i32, %arg1 : i32, i32
  }
  func.func @transform_4(%arg0: i32, %arg1: i32, %arg2: i32) -> (i32, i32) {
    %c0_i32 = arith.constant 0 : i32
    %c0_i32_0 = arith.constant 0 : i32
    return %c0_i32, %arg1 : i32, i32
  }
  func.func @transform_5(%arg0: i32, %arg1: i32, %arg2: i32) -> (i32, i32) {
    %c0_i32 = arith.constant 0 : i32
    %c0_i32_0 = arith.constant 0 : i32
    return %c0_i32, %arg1 : i32, i32
  }
  func.func @transform_6(%arg0: i32, %arg1: i32, %arg2: i32) -> (i32, i32) {
    %c0_i32 = arith.constant 0 : i32
    %c0_i32_0 = arith.constant 0 : i32
    return %arg0, %c0_i32 : i32, i32
  }
  func.func @transform_7(%arg0: i32, %arg1: i32, %arg2: i32) -> (i32, i32) {
    %c0_i32 = arith.constant 0 : i32
    return %arg0, %arg1 : i32, i32
  }
}

</mosaic_0001>

<llo_original>
// kernel: run.2
$region0: #{run.2}
  #allocation0 [shape = 'u32[]', space=smem, size = 0x4, offset = 0x4, fixed_abs, tag = 'smem constant byte address 0x4 - core index']
  #allocation1 [shape = 'u32[72,128]{1,0:T(1,128)}', space=vmem, size = 0x9000, scoped, tag = 'internal scratch']
  #allocation2 [shape = 'f32[32,128]{1,0:T(8,128)}', space=vmem, size = 0x4000, scoped, tag = 'scratch operand']
  %s0 = inlined_call_operand.vmem [shape: s8[32,128], index: 0, kind: input, shape index: {}]
  %s1 = inlined_call_operand.vmem [shape: bf16[128,128], index: 1, kind: input, shape index: {}, may-alias: {1,2}]
  %s2 = inlined_call_operand.vmem [shape: bf16[128,128], index: 2, kind: input, shape index: {}, may-alias: {1,2}]
  %s3 = inlined_call_operand.vmem [shape: bf16[128,128], index: 3, kind: input, shape index: {}]
  %s4 = inlined_call_operand.vmem [shape: bf16[128,128], index: 4, kind: input, shape index: {}]
  %s5 = inlined_call_operand.vmem [shape: f32[1,128], index: 5, kind: input, shape index: {}]
  %s6 = inlined_call_operand.vmem [shape: f32[32,1], index: 6, kind: input, shape index: {}]
  %s7 = inlined_call_operand.vmem [shape: bf16[32,128], index: 7, kind: output, shape index: {}]
  %s8 = sld [smem:[#allocation0]]
  $region46: #{run.2} parent=0
    _
  %s10 = ssub.s32 1, %s8
  %s11 = scalar_select 0, %s10, %s8
  // Predicated region
  $region2: #{run.2} parent=0 // pred_check
    _
  $region3: #{run.2} parent=0 // pred_check_branch
    %13 = sbr.rel (0) target = $region5
  $region4: #{run.2} parent=0 // pred_region
    _
  $region5: #{run.2} parent=0 // pred_fallthru
    _
  // Predicated region
  $region6: #{run.2} parent=0 // pred_check
    _
  $region7: #{run.2} parent=0 // pred_check_branch
    %15 = sbr.rel (0) target = $region9
  $region8: #{run.2} parent=0 // pred_region
    _
  $region9: #{run.2} parent=0 // pred_fallthru
    _
  // Predicated region
  $region10: #{run.2} parent=0 // pred_check
    _
  $region11: #{run.2} parent=0 // pred_check_branch
    %17 = sbr.rel (0) target = $region13
  $region12: #{run.2} parent=0 // pred_region
    _
  $region13: #{run.2} parent=0 // pred_fallthru
    _
  // Predicated region
  $region14: #{run.2} parent=0 // pred_check
    _
  $region15: #{run.2} parent=0 // pred_check_branch
    %19 = sbr.rel (0) target = $region17
  $region16: #{run.2} parent=0 // pred_region
    _
  $region17: #{run.2} parent=0 // pred_fallthru
    _
  // Predicated region
  $region18: #{run.2} parent=0 // pred_check
    _
  $region19: #{run.2} parent=0 // pred_check_branch
    %21 = sbr.rel (0) target = $region21
  $region20: #{run.2} parent=0 // pred_region
    _
  $region21: #{run.2} parent=0 // pred_fallthru
    _
  // Predicated region
  $region22: #{run.2} parent=0 // pred_check
    _
  $region23: #{run.2} parent=0 // pred_check_branch
    %23 = sbr.rel (0) target = $region25
  $region24: #{run.2} parent=0 // pred_region
    _
  $region25: #{run.2} parent=0 // pred_fallthru
    _
  // Predicated region
  $region26: #{run.2} parent=0 // pred_check
    _
  $region27: #{run.2} parent=0 // pred_check_branch
    %25 = sbr.rel (0) target = $region29
  $region28: #{run.2} parent=0 // pred_region
    _
  $region29: #{run.2} parent=0 // pred_fallthru
    _
  %p26 = scmp.eq.s32.totalorder 0, 0
  // Predicated region
  $region30: #{run.2} parent=0 // pred_check
    %p27 = pneg %p26
  $region31: #{run.2} parent=0 // pred_check_branch
    %29 = sbr.rel (%p27) target = $region33
  $region32: #{run.2} parent=0 // pred_region
    %30 = vst [vmem:[#allocation2] sm:$0xff] 0.0
    %31 = vst [vmem:[#allocation2 + $0x8] sm:$0xff] 0.0
    %32 = vst [vmem:[#allocation2 + $0x10] sm:$0xff] 0.0
    %33 = vst [vmem:[#allocation2 + $0x18] sm:$0xff] 0.0
  $region33: #{run.2} parent=0 // pred_fallthru
    _
  %v34 = vld [vmem:[%s1] sm:$0xf]
  %v35 = vld [vmem:[%s1 + $0x4] sm:$0xf]
  %v36 = vld [vmem:[%s1 + $0x8] sm:$0xf]
  %v37 = vld [vmem:[%s1 + $0xc] sm:$0xf]
  %v38 = vld [vmem:[%s1 + $0x10] sm:$0xf]
  %v39 = vld [vmem:[%s1 + $0x14] sm:$0xf]
  %v40 = vld [vmem:[%s1 + $0x18] sm:$0xf]
  %v41 = vld [vmem:[%s1 + $0x1c] sm:$0xf]
  %v42 = vld [vmem:[%s1 + $0x20] sm:$0xf]
  %v43 = vld [vmem:[%s1 + $0x24] sm:$0xf]
  %v44 = vld [vmem:[%s1 + $0x28] sm:$0xf]
  %v45 = vld [vmem:[%s1 + $0x2c] sm:$0xf]
  %v46 = vld [vmem:[%s1 + $0x30] sm:$0xf]
  %v47 = vld [vmem:[%s1 + $0x34] sm:$0xf]
  %v48 = vld [vmem:[%s1 + $0x38] sm:$0xf]
  %v49 = vld [vmem:[%s1 + $0x3c] sm:$0xf]
  %v50 = vld [vmem:[%s3] sm:$0xf]
  %v51 = vld [vmem:[%s3 + $0x4] sm:$0xf]
  %v52 = vld [vmem:[%s3 + $0x8] sm:$0xf]
  %v53 = vld [vmem:[%s3 + $0xc] sm:$0xf]
  %v54 = vld [vmem:[%s3 + $0x10] sm:$0xf]
  %v55 = vld [vmem:[%s3 + $0x14] sm:$0xf]
  %v56 = vld [vmem:[%s3 + $0x18] sm:$0xf]
  %v57 = vld [vmem:[%s3 + $0x1c] sm:$0xf]
  %v58 = vld [vmem:[%s3 + $0x20] sm:$0xf]
  %v59 = vld [vmem:[%s3 + $0x24] sm:$0xf]
  %v60 = vld [vmem:[%s3 + $0x28] sm:$0xf]
  %v61 = vld [vmem:[%s3 + $0x2c] sm:$0xf]
  %v62 = vld [vmem:[%s3 + $0x30] sm:$0xf]
  %v63 = vld [vmem:[%s3 + $0x34] sm:$0xf]
  %v64 = vld [vmem:[%s3 + $0x38] sm:$0xf]
  %v65 = vld [vmem:[%s3 + $0x3c] sm:$0xf]
  %v82 = vunpack.c.l.b16 %v34
  %v83 = vunpack.c.l.b16 %v35
  %v84 = vunpack.c.l.b16 %v36
  %v85 = vunpack.c.l.b16 %v37
  %v86 = vunpack.c.l.b16 %v38
  %v87 = vunpack.c.l.b16 %v39
  %v88 = vunpack.c.l.b16 %v40
  %v89 = vunpack.c.l.b16 %v41
  %v90 = vunpack.c.l.b16 %v42
  %v91 = vunpack.c.l.b16 %v43
  %v92 = vunpack.c.l.b16 %v44
  %v93 = vunpack.c.l.b16 %v45
  %v94 = vunpack.c.l.b16 %v46
  %v95 = vunpack.c.l.b16 %v47
  %v96 = vunpack.c.l.b16 %v48
  %v97 = vunpack.c.l.b16 %v49
  %v98 = vpack.c.b16 %v83, %v82
  %v99 = vpack.c.b16 %v85, %v84
  %v100 = vpack.c.b16 %v87, %v86
  %v101 = vpack.c.b16 %v89, %v88
  %v102 = vpack.c.b16 %v91, %v90
  %v103 = vpack.c.b16 %v93, %v92
  %v104 = vpack.c.b16 %v95, %v94
  %v105 = vpack.c.b16 %v97, %v96
  %v130 = vunpack.c.l.b16 %v50
  %v131 = vunpack.c.l.b16 %v51
  %v132 = vunpack.c.l.b16 %v52
  %v133 = vunpack.c.l.b16 %v53
  %v134 = vunpack.c.l.b16 %v54
  %v135 = vunpack.c.l.b16 %v55
  %v136 = vunpack.c.l.b16 %v56
  %v137 = vunpack.c.l.b16 %v57
  %v138 = vunpack.c.l.b16 %v58
  %v139 = vunpack.c.l.b16 %v59
  %v140 = vunpack.c.l.b16 %v60
  %v141 = vunpack.c.l.b16 %v61
  %v142 = vunpack.c.l.b16 %v62
  %v143 = vunpack.c.l.b16 %v63
  %v144 = vunpack.c.l.b16 %v64
  %v145 = vunpack.c.l.b16 %v65
  %v146 = vpack.c.b16 %v131, %v130
  %v147 = vpack.c.b16 %v133, %v132
  %v148 = vpack.c.b16 %v135, %v134
  %v149 = vpack.c.b16 %v137, %v136
  %v150 = vpack.c.b16 %v139, %v138
  %v151 = vpack.c.b16 %v141, %v140
  %v152 = vpack.c.b16 %v143, %v142
  %v153 = vpack.c.b16 %v145, %v144
  %162 = vmatpush.bf16.msra.mxu0 %v153
  %163 = vmatpush.bf16.msra.mxu0 %v152
  %164 = vmatpush.bf16.msra.mxu0 %v151
  %165 = vmatpush.bf16.msra.mxu0 %v150
  %166 = vmatpush.bf16.msra.mxu0 %v149
  %167 = vmatpush.bf16.msra.mxu0 %v148
  %168 = vmatpush.bf16.msra.mxu0 %v147
  %169 = vmatpush.bf16.msra.mxu0 %v146
  %170 = vmatmul.bf16.gmra.mxu0 %v98
  %v171 = vpop.f32.mrf.mxu0
  %v172 = vadd.f32 0.0, %v171
  %v173 = vpop.f32.mrf.mxu0
  %v174 = vadd.f32 0.0, %v173
  %175 = vmatmul.bf16.gmra.mxu0 %v99
  %v176 = vpop.f32.mrf.mxu0
  %v177 = vadd.f32 0.0, %v176
  %v178 = vpop.f32.mrf.mxu0
  %v179 = vadd.f32 0.0, %v178
  %180 = vmatmul.bf16.gmra.mxu0 %v100
  %v181 = vpop.f32.mrf.mxu0
  %v182 = vadd.f32 0.0, %v181
  %v183 = vpop.f32.mrf.mxu0
  %v184 = vadd.f32 0.0, %v183
  %185 = vmatmul.bf16.gmra.mxu0 %v101
  %v186 = vpop.f32.mrf.mxu0
  %v187 = vadd.f32 0.0, %v186
  %v188 = vpop.f32.mrf.mxu0
  %v189 = vadd.f32 0.0, %v188
  %190 = vmatmul.bf16.gmra.mxu0 %v102
  %v191 = vpop.f32.mrf.mxu0
  %v192 = vadd.f32 0.0, %v191
  %v193 = vpop.f32.mrf.mxu0
  %v194 = vadd.f32 0.0, %v193
  %195 = vmatmul.bf16.gmra.mxu0 %v103
  %v196 = vpop.f32.mrf.mxu0
  %v197 = vadd.f32 0.0, %v196
  %v198 = vpop.f32.mrf.mxu0
  %v199 = vadd.f32 0.0, %v198
  %200 = vmatmul.bf16.gmra.mxu0 %v104
  %v201 = vpop.f32.mrf.mxu0
  %v202 = vadd.f32 0.0, %v201
  %v203 = vpop.f32.mrf.mxu0
  %v204 = vadd.f32 0.0, %v203
  %205 = vmatmul.bf16.gmra.mxu0 %v105
  %v206 = vpop.f32.mrf.mxu0
  %v207 = vadd.f32 0.0, %v206
  %v208 = vpop.f32.mrf.mxu0
  %v209 = vadd.f32 0.0, %v208
  %210 = vdwg.mxu0
  %v211 = vpack.c.bf16 %v174, %v172
  %v212 = vpack.c.bf16 %v179, %v177
  %v213 = vpack.c.bf16 %v184, %v182
  %v214 = vpack.c.bf16 %v189, %v187
  %v215 = vpack.c.bf16 %v194, %v192
  %v216 = vpack.c.bf16 %v199, %v197
  %v217 = vpack.c.bf16 %v204, %v202
  %v218 = vpack.c.bf16 %v209, %v207
  %v219 = vld [vmem:[%s0] sm:$0xff]
  %v220 = vunpack.c.0.s8 %v219
  %v221 = vunpack.c.1.s8 %v219
  %v222 = vunpack.c.2.s8 %v219
  %v223 = vunpack.c.3.s8 %v219
  %v224 = vcvt.s32.f32 %v220
  %v225 = vcvt.s32.f32 %v221
  %v226 = vcvt.s32.f32 %v222
  %v227 = vcvt.s32.f32 %v223
  %v228 = vpack.c.bf16 %v225, %v224
  %v229 = vpack.c.bf16 %v227, %v226
  %v230 = vld [vmem:[#allocation2] sm:$0xff]
  %v231 = vld [vmem:[#allocation2 + $0x8] sm:$0xff]
  %v232 = vld [vmem:[#allocation2 + $0x10] sm:$0xff]
  %v233 = vld [vmem:[#allocation2 + $0x18] sm:$0xff]
  %234 = vmatpush.bf16.msra.mxu0 %v218
  %235 = vmatpush.bf16.msra.mxu0 %v217
  %236 = vmatpush.bf16.msra.mxu0 %v216
  %237 = vmatpush.bf16.msra.mxu0 %v215
  %238 = vmatpush.bf16.msra.mxu0 %v214
  %239 = vmatpush.bf16.msra.mxu0 %v213
  %240 = vmatpush.bf16.msra.mxu0 %v212
  %241 = vmatpush.bf16.msra.mxu0 %v211
  %242 = vmatmul.bf16.gmra.mxu0 %v228
  %v243 = vpop.f32.mrf.mxu0
  %v244 = vadd.f32 0.0, %v243
  %v245 = vpop.f32.mrf.mxu0
  %v246 = vadd.f32 0.0, %v245
  %247 = vmatmul.bf16.gmra.mxu0 %v229
  %v248 = vpop.f32.mrf.mxu0
  %v249 = vadd.f32 0.0, %v248
  %v250 = vpop.f32.mrf.mxu0
  %v251 = vadd.f32 0.0, %v250
  %252 = vdwg.mxu0
  %v253 = vadd.f32 %v230, %v244
  %v254 = vadd.f32 %v231, %v246
  %v255 = vadd.f32 %v232, %v249
  %v256 = vadd.f32 %v233, %v251
  %257 = vst [vmem:[#allocation2] sm:$0xff] %v253
  %258 = vst [vmem:[#allocation2 + $0x8] sm:$0xff] %v254
  %259 = vst [vmem:[#allocation2 + $0x10] sm:$0xff] %v255
  %260 = vst [vmem:[#allocation2 + $0x18] sm:$0xff] %v256
  // Predicated region
  $region34: #{run.2} parent=0 // pred_check
    %p261 = pneg %p26
  $region35: #{run.2} parent=0 // pred_check_branch
    %263 = sbr.rel (%p261) target = $region37
  $region36: #{run.2} parent=0 // pred_region
    %v264 = vld [vmem:[%s2] sm:$0xf]
    %v265 = vld [vmem:[%s2 + $0x4] sm:$0xf]
    %v266 = vld [vmem:[%s2 + $0x8] sm:$0xf]
    %v267 = vld [vmem:[%s2 + $0xc] sm:$0xf]
    %v268 = vld [vmem:[%s4] sm:$0xf]
    %v269 = vld [vmem:[%s4 + $0x4] sm:$0xf]
    %v270 = vld [vmem:[%s4 + $0x8] sm:$0xf]
    %v271 = vld [vmem:[%s4 + $0xc] sm:$0xf]
    %v272 = vld [vmem:[%s4 + $0x10] sm:$0xf]
    %v273 = vld [vmem:[%s4 + $0x14] sm:$0xf]
    %v274 = vld [vmem:[%s4 + $0x18] sm:$0xf]
    %v275 = vld [vmem:[%s4 + $0x1c] sm:$0xf]
    %v276 = vld [vmem:[%s4 + $0x20] sm:$0xf]
    %v277 = vld [vmem:[%s4 + $0x24] sm:$0xf]
    %v278 = vld [vmem:[%s4 + $0x28] sm:$0xf]
    %v279 = vld [vmem:[%s4 + $0x2c] sm:$0xf]
    %v280 = vld [vmem:[%s4 + $0x30] sm:$0xf]
    %v281 = vld [vmem:[%s4 + $0x34] sm:$0xf]
    %v282 = vld [vmem:[%s4 + $0x38] sm:$0xf]
    %v283 = vld [vmem:[%s4 + $0x3c] sm:$0xf]
    %v284 = vld [vmem:[%s5] sm:$0x1]
    %v286 = vperm.slane %v284, 0
    %v292 = vunpack.c.l.b16 %v264
    %v293 = vunpack.c.l.b16 %v265
    %v294 = vunpack.c.l.b16 %v266
    %v295 = vunpack.c.l.b16 %v267
    %v296 = vpack.c.b16 %v293, %v292
    %v297 = vpack.c.b16 %v295, %v294
    %v316 = vunpack.c.l.b16 %v268
    %v317 = vunpack.c.l.b16 %v269
    %v318 = vunpack.c.l.b16 %v270
    %v319 = vunpack.c.l.b16 %v271
    %v320 = vunpack.c.l.b16 %v272
    %v321 = vunpack.c.l.b16 %v273
    %v322 = vunpack.c.l.b16 %v274
    %v323 = vunpack.c.l.b16 %v275
    %v324 = vunpack.c.l.b16 %v276
    %v325 = vunpack.c.l.b16 %v277
    %v326 = vunpack.c.l.b16 %v278
    %v327 = vunpack.c.l.b16 %v279
    %v328 = vunpack.c.l.b16 %v280
    %v329 = vunpack.c.l.b16 %v281
    %v330 = vunpack.c.l.b16 %v282
    %v331 = vunpack.c.l.b16 %v283
    %v332 = vpack.c.b16 %v317, %v316
    %v333 = vpack.c.b16 %v319, %v318
    %v334 = vpack.c.b16 %v321, %v320
    %v335 = vpack.c.b16 %v323, %v322
    %v336 = vpack.c.b16 %v325, %v324
    %v337 = vpack.c.b16 %v327, %v326
    %v338 = vpack.c.b16 %v329, %v328
    %v339 = vpack.c.b16 %v331, %v330
    %348 = vmatpush.bf16.msra.mxu0 %v339
    %349 = vmatpush.bf16.msra.mxu0 %v338
    %350 = vmatpush.bf16.msra.mxu0 %v337
    %351 = vmatpush.bf16.msra.mxu0 %v336
    %352 = vmatpush.bf16.msra.mxu0 %v335
    %353 = vmatpush.bf16.msra.mxu0 %v334
    %354 = vmatpush.bf16.msra.mxu0 %v333
    %355 = vmatpush.bf16.msra.mxu0 %v332
    %356 = vmatmul.bf16.gmra.mxu0 %v296
    %v357 = vpop.f32.mrf.mxu0
    %v358 = vadd.f32 %v286, %v357
    %v359 = vpop.f32.mrf.mxu0
    %v360 = vadd.f32 %v286, %v359
    %361 = vmatmul.bf16.gmra.mxu0 %v297
    %v362 = vpop.f32.mrf.mxu0
    %v363 = vadd.f32 %v286, %v362
    %v364 = vpop.f32.mrf.mxu0
    %v365 = vadd.f32 %v286, %v364
    %366 = vdwg.mxu0
    %v367 = vld [vmem:[%s6] sm:$0xff]
    %v368 = vld [vmem:[%s6 + $0x8] sm:$0xff]
    %v369 = vld [vmem:[%s6 + $0x10] sm:$0xff]
    %v370 = vld [vmem:[%s6 + $0x18] sm:$0xff]
    %v371 = vld [vmem:[#allocation2] sm:$0xff]
    %v372 = vld [vmem:[#allocation2 + $0x8] sm:$0xff]
    %v373 = vld [vmem:[#allocation2 + $0x10] sm:$0xff]
    %v374 = vld [vmem:[#allocation2 + $0x18] sm:$0xff]
    %376 = vset.pattern.permute.xlu0 0
    %377 = vperm.xlu0 %376, %v367
    %v378 = vpop.permute.xlu0 %377
    %381 = vset.pattern.permute.xlu0 0
    %382 = vperm.xlu0 %381, %v368
    %v383 = vpop.permute.xlu0 %382
    %386 = vset.pattern.permute.xlu0 0
    %387 = vperm.xlu0 %386, %v369
    %v388 = vpop.permute.xlu0 %387
    %391 = vset.pattern.permute.xlu0 0
    %392 = vperm.xlu0 %391, %v370
    %v393 = vpop.permute.xlu0 %392
    %v395 = vmul.f32 %v378, %v371
    %v396 = vmul.f32 %v383, %v372
    %v397 = vmul.f32 %v388, %v373
    %v398 = vmul.f32 %v393, %v374
    %v399 = vadd.f32 %v358, %v395
    %v400 = vadd.f32 %v360, %v396
    %v401 = vadd.f32 %v363, %v397
    %v402 = vadd.f32 %v365, %v398
    %v403 = vmax.f32 %v399, 0.0
    %v404 = vmax.f32 %v400, 0.0
    %v405 = vmax.f32 %v401, 0.0
    %v406 = vmax.f32 %v402, 0.0
    %v407 = vpack.c.bf16 %v403, %v403
    %v408 = vpack.c.bf16 %v404, %v404
    %v409 = vpack.c.bf16 %v405, %v405
    %v410 = vpack.c.bf16 %v406, %v406
    %411 = vst [vmem:[%s7] sm:$0xf] %v407
    %412 = vst [vmem:[%s7 + $0x4] sm:$0xf] %v408
    %413 = vst [vmem:[%s7 + $0x8] sm:$0xf] %v409
    %414 = vst [vmem:[%s7 + $0xc] sm:$0xf] %v410
  $region37: #{run.2} parent=0 // pred_fallthru
    _
  // Predicated region
  $region38: #{run.2} parent=0 // pred_check
    _
  $region39: #{run.2} parent=0 // pred_check_branch
    %416 = sbr.rel (0) target = $region41
  $region40: #{run.2} parent=0 // pred_region
    _
  $region41: #{run.2} parent=0 // pred_fallthru
    _
  // Predicated region
  $region42: #{run.2} parent=0 // pred_check
    _
  $region43: #{run.2} parent=0 // pred_check_branch
    %418 = sbr.rel (0) target = $region45
  $region44: #{run.2} parent=0 // pred_region
    _
  $region45: #{run.2} parent=0 // pred_fallthru
    _

// kernel: run.3
$region0: #{run.3}
  #allocation0 [shape = 'u32[]', space=smem, size = 0x4, offset = 0x4, fixed_abs, tag = 'smem constant byte address 0x4 - core index']
  #allocation1 [shape = 'u32[72,128]{1,0:T(1,128)}', space=vmem, size = 0x9000, scoped, tag = 'internal scratch']
  #allocation2 [shape = 'f32[32,128]{1,0:T(8,128)}', space=vmem, size = 0x4000, scoped, tag = 'scratch operand']
  %s0 = inlined_call_operand.vmem [shape: s8[32,128], index: 0, kind: input, shape index: {}]
  %s1 = inlined_call_operand.vmem [shape: bf16[128,128], index: 1, kind: input, shape index: {}, may-alias: {1,2}]
  %s2 = inlined_call_operand.vmem [shape: bf16[128,128], index: 2, kind: input, shape index: {}, may-alias: {1,2}]
  %s3 = inlined_call_operand.vmem [shape: bf16[128,128], index: 3, kind: input, shape index: {}]
  %s4 = inlined_call_operand.vmem [shape: bf16[128,128], index: 4, kind: input, shape index: {}]
  %s5 = inlined_call_operand.vmem [shape: f32[1,128], index: 5, kind: input, shape index: {}]
  %s6 = inlined_call_operand.vmem [shape: f32[32,1], index: 6, kind: input, shape index: {}]
  %s7 = inlined_call_operand.vmem [shape: f32[32,128], index: 7, kind: output, shape index: {}]
  %s8 = sld [smem:[#allocation0]]
  $region46: #{run.3} parent=0
    _
  %s10 = ssub.s32 1, %s8
  %s11 = scalar_select 0, %s10, %s8
  // Predicated region
  $region2: #{run.3} parent=0 // pred_check
    _
  $region3: #{run.3} parent=0 // pred_check_branch
    %13 = sbr.rel (0) target = $region5
  $region4: #{run.3} parent=0 // pred_region
    _
  $region5: #{run.3} parent=0 // pred_fallthru
    _
  // Predicated region
  $region6: #{run.3} parent=0 // pred_check
    _
  $region7: #{run.3} parent=0 // pred_check_branch
    %15 = sbr.rel (0) target = $region9
  $region8: #{run.3} parent=0 // pred_region
    _
  $region9: #{run.3} parent=0 // pred_fallthru
    _
  // Predicated region
  $region10: #{run.3} parent=0 // pred_check
    _
  $region11: #{run.3} parent=0 // pred_check_branch
    %17 = sbr.rel (0) target = $region13
  $region12: #{run.3} parent=0 // pred_region
    _
  $region13: #{run.3} parent=0 // pred_fallthru
    _
  // Predicated region
  $region14: #{run.3} parent=0 // pred_check
    _
  $region15: #{run.3} parent=0 // pred_check_branch
    %19 = sbr.rel (0) target = $region17
  $region16: #{run.3} parent=0 // pred_region
    _
  $region17: #{run.3} parent=0 // pred_fallthru
    _
  // Predicated region
  $region18: #{run.3} parent=0 // pred_check
    _
  $region19: #{run.3} parent=0 // pred_check_branch
    %21 = sbr.rel (0) target = $region21
  $region20: #{run.3} parent=0 // pred_region
    _
  $region21: #{run.3} parent=0 // pred_fallthru
    _
  // Predicated region
  $region22: #{run.3} parent=0 // pred_check
    _
  $region23: #{run.3} parent=0 // pred_check_branch
    %23 = sbr.rel (0) target = $region25
  $region24: #{run.3} parent=0 // pred_region
    _
  $region25: #{run.3} parent=0 // pred_fallthru
    _
  // Predicated region
  $region26: #{run.3} parent=0 // pred_check
    _
  $region27: #{run.3} parent=0 // pred_check_branch
    %25 = sbr.rel (0) target = $region29
  $region28: #{run.3} parent=0 // pred_region
    _
  $region29: #{run.3} parent=0 // pred_fallthru
    _
  %p26 = scmp.eq.s32.totalorder 0, 0
  // Predicated region
  $region30: #{run.3} parent=0 // pred_check
    %p27 = pneg %p26
  $region31: #{run.3} parent=0 // pred_check_branch
    %29 = sbr.rel (%p27) target = $region33
  $region32: #{run.3} parent=0 // pred_region
    %30 = vst [vmem:[#allocation2] sm:$0xff] 0.0
    %31 = vst [vmem:[#allocation2 + $0x8] sm:$0xff] 0.0
    %32 = vst [vmem:[#allocation2 + $0x10] sm:$0xff] 0.0
    %33 = vst [vmem:[#allocation2 + $0x18] sm:$0xff] 0.0
  $region33: #{run.3} parent=0 // pred_fallthru
    _
  %v34 = vld [vmem:[%s1] sm:$0xf]
  %v35 = vld [vmem:[%s1 + $0x4] sm:$0xf]
  %v36 = vld [vmem:[%s1 + $0x8] sm:$0xf]
  %v37 = vld [vmem:[%s1 + $0xc] sm:$0xf]
  %v38 = vld [vmem:[%s1 + $0x10] sm:$0xf]
  %v39 = vld [vmem:[%s1 + $0x14] sm:$0xf]
  %v40 = vld [vmem:[%s1 + $0x18] sm:$0xf]
  %v41 = vld [vmem:[%s1 + $0x1c] sm:$0xf]
  %v42 = vld [vmem:[%s1 + $0x20] sm:$0xf]
  %v43 = vld [vmem:[%s1 + $0x24] sm:$0xf]
  %v44 = vld [vmem:[%s1 + $0x28] sm:$0xf]
  %v45 = vld [vmem:[%s1 + $0x2c] sm:$0xf]
  %v46 = vld [vmem:[%s1 + $0x30] sm:$0xf]
  %v47 = vld [vmem:[%s1 + $0x34] sm:$0xf]
  %v48 = vld [vmem:[%s1 + $0x38] sm:$0xf]
  %v49 = vld [vmem:[%s1 + $0x3c] sm:$0xf]
  %v50 = vld [vmem:[%s3] sm:$0xf]
  %v51 = vld [vmem:[%s3 + $0x4] sm:$0xf]
  %v52 = vld [vmem:[%s3 + $0x8] sm:$0xf]
  %v53 = vld [vmem:[%s3 + $0xc] sm:$0xf]
  %v54 = vld [vmem:[%s3 + $0x10] sm:$0xf]
  %v55 = vld [vmem:[%s3 + $0x14] sm:$0xf]
  %v56 = vld [vmem:[%s3 + $0x18] sm:$0xf]
  %v57 = vld [vmem:[%s3 + $0x1c] sm:$0xf]
  %v58 = vld [vmem:[%s3 + $0x20] sm:$0xf]
  %v59 = vld [vmem:[%s3 + $0x24] sm:$0xf]
  %v60 = vld [vmem:[%s3 + $0x28] sm:$0xf]
  %v61 = vld [vmem:[%s3 + $0x2c] sm:$0xf]
  %v62 = vld [vmem:[%s3 + $0x30] sm:$0xf]
  %v63 = vld [vmem:[%s3 + $0x34] sm:$0xf]
  %v64 = vld [vmem:[%s3 + $0x38] sm:$0xf]
  %v65 = vld [vmem:[%s3 + $0x3c] sm:$0xf]
  %v82 = vunpack.c.l.b16 %v34
  %v83 = vunpack.c.l.b16 %v35
  %v84 = vunpack.c.l.b16 %v36
  %v85 = vunpack.c.l.b16 %v37
  %v86 = vunpack.c.l.b16 %v38
  %v87 = vunpack.c.l.b16 %v39
  %v88 = vunpack.c.l.b16 %v40
  %v89 = vunpack.c.l.b16 %v41
  %v90 = vunpack.c.l.b16 %v42
  %v91 = vunpack.c.l.b16 %v43
  %v92 = vunpack.c.l.b16 %v44
  %v93 = vunpack.c.l.b16 %v45
  %v94 = vunpack.c.l.b16 %v46
  %v95 = vunpack.c.l.b16 %v47
  %v96 = vunpack.c.l.b16 %v48
  %v97 = vunpack.c.l.b16 %v49
  %v98 = vpack.c.b16 %v83, %v82
  %v99 = vpack.c.b16 %v85, %v84
  %v100 = vpack.c.b16 %v87, %v86
  %v101 = vpack.c.b16 %v89, %v88
  %v102 = vpack.c.b16 %v91, %v90
  %v103 = vpack.c.b16 %v93, %v92
  %v104 = vpack.c.b16 %v95, %v94
  %v105 = vpack.c.b16 %v97, %v96
  %v130 = vunpack.c.l.b16 %v50
  %v131 = vunpack.c.l.b16 %v51
  %v132 = vunpack.c.l.b16 %v52
  %v133 = vunpack.c.l.b16 %v53
  %v134 = vunpack.c.l.b16 %v54
  %v135 = vunpack.c.l.b16 %v55
  %v136 = vunpack.c.l.b16 %v56
  %v137 = vunpack.c.l.b16 %v57
  %v138 = vunpack.c.l.b16 %v58
  %v139 = vunpack.c.l.b16 %v59
  %v140 = vunpack.c.l.b16 %v60
  %v141 = vunpack.c.l.b16 %v61
  %v142 = vunpack.c.l.b16 %v62
  %v143 = vunpack.c.l.b16 %v63
  %v144 = vunpack.c.l.b16 %v64
  %v145 = vunpack.c.l.b16 %v65
  %v146 = vpack.c.b16 %v131, %v130
  %v147 = vpack.c.b16 %v133, %v132
  %v148 = vpack.c.b16 %v135, %v134
  %v149 = vpack.c.b16 %v137, %v136
  %v150 = vpack.c.b16 %v139, %v138
  %v151 = vpack.c.b16 %v141, %v140
  %v152 = vpack.c.b16 %v143, %v142
  %v153 = vpack.c.b16 %v145, %v144
  %162 = vmatpush.bf16.msra.mxu0 %v153
  %163 = vmatpush.bf16.msra.mxu0 %v152
  %164 = vmatpush.bf16.msra.mxu0 %v151
  %165 = vmatpush.bf16.msra.mxu0 %v150
  %166 = vmatpush.bf16.msra.mxu0 %v149
  %167 = vmatpush.bf16.msra.mxu0 %v148
  %168 = vmatpush.bf16.msra.mxu0 %v147
  %169 = vmatpush.bf16.msra.mxu0 %v146
  %170 = vmatmul.bf16.gmra.mxu0 %v98
  %v171 = vpop.f32.mrf.mxu0
  %v172 = vadd.f32 0.0, %v171
  %v173 = vpop.f32.mrf.mxu0
  %v174 = vadd.f32 0.0, %v173
  %175 = vmatmul.bf16.gmra.mxu0 %v99
  %v176 = vpop.f32.mrf.mxu0
  %v177 = vadd.f32 0.0, %v176
  %v178 = vpop.f32.mrf.mxu0
  %v179 = vadd.f32 0.0, %v178
  %180 = vmatmul.bf16.gmra.mxu0 %v100
  %v181 = vpop.f32.mrf.mxu0
  %v182 = vadd.f32 0.0, %v181
  %v183 = vpop.f32.mrf.mxu0
  %v184 = vadd.f32 0.0, %v183
  %185 = vmatmul.bf16.gmra.mxu0 %v101
  %v186 = vpop.f32.mrf.mxu0
  %v187 = vadd.f32 0.0, %v186
  %v188 = vpop.f32.mrf.mxu0
  %v189 = vadd.f32 0.0, %v188
  %190 = vmatmul.bf16.gmra.mxu0 %v102
  %v191 = vpop.f32.mrf.mxu0
  %v192 = vadd.f32 0.0, %v191
  %v193 = vpop.f32.mrf.mxu0
  %v194 = vadd.f32 0.0, %v193
  %195 = vmatmul.bf16.gmra.mxu0 %v103
  %v196 = vpop.f32.mrf.mxu0
  %v197 = vadd.f32 0.0, %v196
  %v198 = vpop.f32.mrf.mxu0
  %v199 = vadd.f32 0.0, %v198
  %200 = vmatmul.bf16.gmra.mxu0 %v104
  %v201 = vpop.f32.mrf.mxu0
  %v202 = vadd.f32 0.0, %v201
  %v203 = vpop.f32.mrf.mxu0
  %v204 = vadd.f32 0.0, %v203
  %205 = vmatmul.bf16.gmra.mxu0 %v105
  %v206 = vpop.f32.mrf.mxu0
  %v207 = vadd.f32 0.0, %v206
  %v208 = vpop.f32.mrf.mxu0
  %v209 = vadd.f32 0.0, %v208
  %210 = vdwg.mxu0
  %v211 = vpack.c.bf16 %v174, %v172
  %v212 = vpack.c.bf16 %v179, %v177
  %v213 = vpack.c.bf16 %v184, %v182
  %v214 = vpack.c.bf16 %v189, %v187
  %v215 = vpack.c.bf16 %v194, %v192
  %v216 = vpack.c.bf16 %v199, %v197
  %v217 = vpack.c.bf16 %v204, %v202
  %v218 = vpack.c.bf16 %v209, %v207
  %v219 = vld [vmem:[%s0] sm:$0xff]
  %v220 = vunpack.c.0.s8 %v219
  %v221 = vunpack.c.1.s8 %v219
  %v222 = vunpack.c.2.s8 %v219
  %v223 = vunpack.c.3.s8 %v219
  %v224 = vcvt.s32.f32 %v220
  %v225 = vcvt.s32.f32 %v221
  %v226 = vcvt.s32.f32 %v222
  %v227 = vcvt.s32.f32 %v223
  %v228 = vpack.c.bf16 %v225, %v224
  %v229 = vpack.c.bf16 %v227, %v226
  %v230 = vld [vmem:[#allocation2] sm:$0xff]
  %v231 = vld [vmem:[#allocation2 + $0x8] sm:$0xff]
  %v232 = vld [vmem:[#allocation2 + $0x10] sm:$0xff]
  %v233 = vld [vmem:[#allocation2 + $0x18] sm:$0xff]
  %234 = vmatpush.bf16.msra.mxu0 %v218
  %235 = vmatpush.bf16.msra.mxu0 %v217
  %236 = vmatpush.bf16.msra.mxu0 %v216
  %237 = vmatpush.bf16.msra.mxu0 %v215
  %238 = vmatpush.bf16.msra.mxu0 %v214
  %239 = vmatpush.bf16.msra.mxu0 %v213
  %240 = vmatpush.bf16.msra.mxu0 %v212
  %241 = vmatpush.bf16.msra.mxu0 %v211
  %242 = vmatmul.bf16.gmra.mxu0 %v228
  %v243 = vpop.f32.mrf.mxu0
  %v244 = vadd.f32 0.0, %v243
  %v245 = vpop.f32.mrf.mxu0
  %v246 = vadd.f32 0.0, %v245
  %247 = vmatmul.bf16.gmra.mxu0 %v229
  %v248 = vpop.f32.mrf.mxu0
  %v249 = vadd.f32 0.0, %v248
  %v250 = vpop.f32.mrf.mxu0
  %v251 = vadd.f32 0.0, %v250
  %252 = vdwg.mxu0
  %v253 = vadd.f32 %v230, %v244
  %v254 = vadd.f32 %v231, %v246
  %v255 = vadd.f32 %v232, %v249
  %v256 = vadd.f32 %v233, %v251
  %257 = vst [vmem:[#allocation2] sm:$0xff] %v253
  %258 = vst [vmem:[#allocation2 + $0x8] sm:$0xff] %v254
  %259 = vst [vmem:[#allocation2 + $0x10] sm:$0xff] %v255
  %260 = vst [vmem:[#allocation2 + $0x18] sm:$0xff] %v256
  // Predicated region
  $region34: #{run.3} parent=0 // pred_check
    %p261 = pneg %p26
  $region35: #{run.3} parent=0 // pred_check_branch
    %263 = sbr.rel (%p261) target = $region37
  $region36: #{run.3} parent=0 // pred_region
    %v264 = vld [vmem:[%s2] sm:$0xf]
    %v265 = vld [vmem:[%s2 + $0x4] sm:$0xf]
    %v266 = vld [vmem:[%s2 + $0x8] sm:$0xf]
    %v267 = vld [vmem:[%s2 + $0xc] sm:$0xf]
    %v268 = vld [vmem:[%s4] sm:$0xf]
    %v269 = vld [vmem:[%s4 + $0x4] sm:$0xf]
    %v270 = vld [vmem:[%s4 + $0x8] sm:$0xf]
    %v271 = vld [vmem:[%s4 + $0xc] sm:$0xf]
    %v272 = vld [vmem:[%s4 + $0x10] sm:$0xf]
    %v273 = vld [vmem:[%s4 + $0x14] sm:$0xf]
    %v274 = vld [vmem:[%s4 + $0x18] sm:$0xf]
    %v275 = vld [vmem:[%s4 + $0x1c] sm:$0xf]
    %v276 = vld [vmem:[%s4 + $0x20] sm:$0xf]
    %v277 = vld [vmem:[%s4 + $0x24] sm:$0xf]
    %v278 = vld [vmem:[%s4 + $0x28] sm:$0xf]
    %v279 = vld [vmem:[%s4 + $0x2c] sm:$0xf]
    %v280 = vld [vmem:[%s4 + $0x30] sm:$0xf]
    %v281 = vld [vmem:[%s4 + $0x34] sm:$0xf]
    %v282 = vld [vmem:[%s4 + $0x38] sm:$0xf]
    %v283 = vld [vmem:[%s4 + $0x3c] sm:$0xf]
    %v284 = vld [vmem:[%s5] sm:$0x1]
    %v286 = vperm.slane %v284, 0
    %v292 = vunpack.c.l.b16 %v264
    %v293 = vunpack.c.l.b16 %v265
    %v294 = vunpack.c.l.b16 %v266
    %v295 = vunpack.c.l.b16 %v267
    %v296 = vpack.c.b16 %v293, %v292
    %v297 = vpack.c.b16 %v295, %v294
    %v316 = vunpack.c.l.b16 %v268
    %v317 = vunpack.c.l.b16 %v269
    %v318 = vunpack.c.l.b16 %v270
    %v319 = vunpack.c.l.b16 %v271
    %v320 = vunpack.c.l.b16 %v272
    %v321 = vunpack.c.l.b16 %v273
    %v322 = vunpack.c.l.b16 %v274
    %v323 = vunpack.c.l.b16 %v275
    %v324 = vunpack.c.l.b16 %v276
    %v325 = vunpack.c.l.b16 %v277
    %v326 = vunpack.c.l.b16 %v278
    %v327 = vunpack.c.l.b16 %v279
    %v328 = vunpack.c.l.b16 %v280
    %v329 = vunpack.c.l.b16 %v281
    %v330 = vunpack.c.l.b16 %v282
    %v331 = vunpack.c.l.b16 %v283
    %v332 = vpack.c.b16 %v317, %v316
    %v333 = vpack.c.b16 %v319, %v318
    %v334 = vpack.c.b16 %v321, %v320
    %v335 = vpack.c.b16 %v323, %v322
    %v336 = vpack.c.b16 %v325, %v324
    %v337 = vpack.c.b16 %v327, %v326
    %v338 = vpack.c.b16 %v329, %v328
    %v339 = vpack.c.b16 %v331, %v330
    %348 = vmatpush.bf16.msra.mxu0 %v339
    %349 = vmatpush.bf16.msra.mxu0 %v338
    %350 = vmatpush.bf16.msra.mxu0 %v337
    %351 = vmatpush.bf16.msra.mxu0 %v336
    %352 = vmatpush.bf16.msra.mxu0 %v335
    %353 = vmatpush.bf16.msra.mxu0 %v334
    %354 = vmatpush.bf16.msra.mxu0 %v333
    %355 = vmatpush.bf16.msra.mxu0 %v332
    %356 = vmatmul.bf16.gmra.mxu0 %v296
    %v357 = vpop.f32.mrf.mxu0
    %v358 = vadd.f32 %v286, %v357
    %v359 = vpop.f32.mrf.mxu0
    %v360 = vadd.f32 %v286, %v359
    %361 = vmatmul.bf16.gmra.mxu0 %v297
    %v362 = vpop.f32.mrf.mxu0
    %v363 = vadd.f32 %v286, %v362
    %v364 = vpop.f32.mrf.mxu0
    %v365 = vadd.f32 %v286, %v364
    %366 = vdwg.mxu0
    %v367 = vld [vmem:[%s6] sm:$0xff]
    %v368 = vld [vmem:[%s6 + $0x8] sm:$0xff]
    %v369 = vld [vmem:[%s6 + $0x10] sm:$0xff]
    %v370 = vld [vmem:[%s6 + $0x18] sm:$0xff]
    %v371 = vld [vmem:[#allocation2] sm:$0xff]
    %v372 = vld [vmem:[#allocation2 + $0x8] sm:$0xff]
    %v373 = vld [vmem:[#allocation2 + $0x10] sm:$0xff]
    %v374 = vld [vmem:[#allocation2 + $0x18] sm:$0xff]
    %376 = vset.pattern.permute.xlu0 0
    %377 = vperm.xlu0 %376, %v367
    %v378 = vpop.permute.xlu0 %377
    %381 = vset.pattern.permute.xlu0 0
    %382 = vperm.xlu0 %381, %v368
    %v383 = vpop.permute.xlu0 %382
    %386 = vset.pattern.permute.xlu0 0
    %387 = vperm.xlu0 %386, %v369
    %v388 = vpop.permute.xlu0 %387
    %391 = vset.pattern.permute.xlu0 0
    %392 = vperm.xlu0 %391, %v370
    %v393 = vpop.permute.xlu0 %392
    %v395 = vmul.f32 %v378, %v371
    %v396 = vmul.f32 %v383, %v372
    %v397 = vmul.f32 %v388, %v373
    %v398 = vmul.f32 %v393, %v374
    %v399 = vadd.f32 %v358, %v395
    %v400 = vadd.f32 %v360, %v396
    %v401 = vadd.f32 %v363, %v397
    %v402 = vadd.f32 %v365, %v398
    %403 = vst [vmem:[%s7] sm:$0xff] %v399
    %404 = vst [vmem:[%s7 + $0x8] sm:$0xff] %v400
    %405 = vst [vmem:[%s7 + $0x10] sm:$0xff] %v401
    %406 = vst [vmem:[%s7 + $0x18] sm:$0xff] %v402
  $region37: #{run.3} parent=0 // pred_fallthru
    _
  // Predicated region
  $region38: #{run.3} parent=0 // pred_check
    _
  $region39: #{run.3} parent=0 // pred_check_branch
    %408 = sbr.rel (0) target = $region41
  $region40: #{run.3} parent=0 // pred_region
    _
  $region41: #{run.3} parent=0 // pred_fallthru
    _
  // Predicated region
  $region42: #{run.3} parent=0 // pred_check
    _
  $region43: #{run.3} parent=0 // pred_check_branch
    %410 = sbr.rel (0) target = $region45
  $region44: #{run.3} parent=0 // pred_region
    _
  $region45: #{run.3} parent=0 // pred_fallthru
    _

</llo_original>
